<compile_context>
chip_gen: v6e
topology: v6e:2x2x1
jax: 0.10.0
libtpu: 0.0.40
codegen_flags: <defaults>
</compile_context>

<pallas_src>
import math

import jax
import jax.numpy as jnp
from jax import lax
from jax.experimental import pallas as pl
from jax.experimental.pallas import tpu as pltpu


# ---------------------------------------------------------------------------
# Kernel 1: one-shot position transform   pe_dyn = pe @ W^T + b
# ---------------------------------------------------------------------------
def _pe_transform_kernel(pe_ref, w_ref, b_ref, o_ref):
    # pe_ref: (S_blk, D)   sinusoidal table tile
    # w_ref : (D, D)       nn.Linear weight, PyTorch (out, in) layout (no wrapper .T)
    # b_ref : (1, D)       bias
    # o_ref : (S_blk, D)   f32 output
    pe_dyn = lax.dot_general(
        pe_ref[...], w_ref[...],
        dimension_numbers=(((1,), (1,)), ((), ())),   # contract "in" dims == pe @ W^T
        preferred_element_type=jnp.float32)
    o_ref[...] = pe_dyn + b_ref[...]


def _position_transform(pe, weight, bias):
    S, D = pe.shape
    S_blk = S if S <= 512 else 512            # 512 is a multiple of 8
    grid = (pl.cdiv(S, S_blk),)
    return pl.pallas_call(
        _pe_transform_kernel,
        out_shape=jax.ShapeDtypeStruct((S, D), jnp.float32),
        grid_spec=pltpu.PrefetchScalarGridSpec(
            num_scalar_prefetch=0,
            grid=grid,
            in_specs=[
                pl.BlockSpec((S_blk, D), lambda i: (i, 0)),   # pe tile
                pl.BlockSpec((D, D), lambda i: (0, 0)),       # weight (resident, not re-DMAed)
                pl.BlockSpec((1, D), lambda i: (0, 0)),       # bias   (resident)
            ],
            out_specs=pl.BlockSpec((S_blk, D), lambda i: (i, 0)),
        ),
        compiler_params=pltpu.CompilerParams(
            dimension_semantics=("parallel",)),
        cost_estimate=pl.CostEstimate(
            flops=2 * S * D * D,
            transcendentals=0,
            bytes_accessed=(2 * S * D + D * D + D) * 4),
    )(pe.astype(jnp.float32), weight.astype(jnp.float32),
      bias.reshape(1, D).astype(jnp.float32))


# ---------------------------------------------------------------------------
# Kernel 2: memory-bound broadcast add   out[b, r, l] = x[b, r, l] + pe[r, l]
# ---------------------------------------------------------------------------
def _bcast_add_kernel(x_ref, pe_ref, o_ref):
    # x_ref : (B_blk, R_blk, L)
    # pe_ref: (R_blk, L) f32 — broadcast over the batch dim
    # o_ref : (B_blk, R_blk, L)
    o_ref[...] = (x_ref[...].astype(jnp.float32) + pe_ref[...]).astype(o_ref.dtype)


def _broadcast_add(x3, pe2, *, row_block_target=2048, block_bytes_target=2 << 20):
    B, R, L = x3.shape
    itemsize = jnp.dtype(x3.dtype).itemsize

    # Rows per block: multiple of 8 when tiling, else the full (possibly small) dim.
    R_blk = R if R <= row_block_target else row_block_target
    # Batch rows per block: target ~2 MiB per x block (amortize per-step overhead,
    # stay well inside the 32 MiB scoped VMEM default even on v7x with 2x buffering).
    per_batch_row_bytes = max(1, R_blk * L * itemsize)
    B_blk = int(max(1, min(B, block_bytes_target // per_batch_row_bytes)))

    grid = (pl.cdiv(B, B_blk), pl.cdiv(R, R_blk))
    return pl.pallas_call(
        _bcast_add_kernel,
        out_shape=jax.ShapeDtypeStruct((B, R, L), x3.dtype),
        grid_spec=pltpu.PrefetchScalarGridSpec(
            num_scalar_prefetch=0,
            grid=grid,
            in_specs=[
                pl.BlockSpec((B_blk, R_blk, L), lambda bi, ri: (bi, ri, 0)),  # x
                pl.BlockSpec((R_blk, L), lambda bi, ri: (ri, 0)),             # pe_dyn
            ],
            out_specs=pl.BlockSpec((B_blk, R_blk, L), lambda bi, ri: (bi, ri, 0)),
        ),
        compiler_params=pltpu.CompilerParams(
            dimension_semantics=("parallel", "parallel")),
        cost_estimate=pl.CostEstimate(
            flops=B * R * L,
            transcendentals=0,
            bytes_accessed=2 * B * R * L * itemsize + R * L * 4),
    )(x3, pe2)


# ---------------------------------------------------------------------------
# Public wrapper
# ---------------------------------------------------------------------------
def diet_positional_encoding(x, pe_table, weight, bias):
    """x: (B, S, D); pe_table: (max_seq_len, D); weight: (D, D) in PyTorch
    nn.Linear (out, in) layout; bias: (D,).
    Returns x + (pe[:S] @ W^T + b); dropout treated as identity (eval mode)."""
    B, S, D = x.shape
    pe = pe_table[:S, :]                                   # glue slice in plain JAX

    # Hoisted, batch-invariant position transform (computed exactly once).
    pe_dyn = _position_transform(pe, weight, bias)         # (S, D) f32

    # Lane-dense flattening of the trailing (S, D) dims when possible.
    if (S * D) % 128 == 0:
        R, L = (S * D) // 128, 128
    else:
        R, L = S, D   # fallback: last dim may be < 128 (masked stores)

    x_flat = x.reshape(B, R, L)
    pe_flat = pe_dyn.reshape(R, L)
    out = _broadcast_add(x_flat, pe_flat)
    return out.reshape(B, S, D)


# ---------------------------------------------------------------------------
# Helpers / self-test
# ---------------------------------------------------------------------------
def make_sinusoidal_pe(max_seq_len, d_model, dtype=jnp.float32):
    position = jnp.arange(max_seq_len, dtype=jnp.float32)[:, None]        # (L, 1)
    div_term = jnp.exp(jnp.arange(0, d_model, 2, dtype=jnp.float32)
                       * -(math.log(10000.0) / d_model))                   # (D/2,)
    pe = jnp.zeros((max_seq_len, d_model), dtype=jnp.float32)
    pe = pe.at[:, 0::2].set(jnp.sin(position * div_term))
    pe = pe.at[:, 1::2].set(jnp.cos(position * div_term))
    return pe.astype(dtype)


def reference(x, pe_table, weight, bias):
    S = x.shape[1]
    pe = pe_table[:S, :]
    pe_dyn = pe @ weight.T + bias
    return x + pe_dyn[None]


if __name__ == "__main__":
    B, S, D = 2, 8, 32
    MAX_SEQ_LEN = 128

    key = jax.random.PRNGKey(0)
    kx, kw, kb = jax.random.split(key, 3)

    x = jax.random.normal(kx, (B, S, D), dtype=jnp.float32)

    # Deterministic nn.Linear-style init (uniform in ±1/sqrt(D)).
    bound = 1.0 / math.sqrt(D)
    weight = jax.random.uniform(kw, (D, D), minval=-bound, maxval=bound,
                                dtype=jnp.float32)
    bias = jax.random.uniform(kb, (D,), minval=-bound, maxval=bound,
                              dtype=jnp.float32)

    pe_table = make_sinusoidal_pe(MAX_SEQ_LEN, D)

    out = diet_positional_encoding(x, pe_table, weight, bias)
    out = jax.block_until_ready(out)

    ref = reference(x, pe_table, weight, bias)
    assert out.shape == (B, S, D)
    assert jnp.allclose(out, ref, atol=1e-5, rtol=1e-5), "mismatch vs reference"

    print("KERNEL_OK")
</pallas_src>

<mosaic_0001>
module attributes {stable_mosaic.version = 11 : i64} {
  func.func @_pe_transform_kernel(%arg0: i32, %arg1: memref<8x32xf32, #tpu.memory_space<vmem>>, %arg2: memref<32x32xf32, #tpu.memory_space<vmem>>, %arg3: memref<1x32xf32, #tpu.memory_space<vmem>>, %arg4: memref<8x32xf32, #tpu.memory_space<vmem>>) attributes {dimension_semantics = [#tpu.dimension_semantics<parallel>], iteration_bounds = array<i64: 1>, scalar_prefetch = 0 : i64, scratch_operands = 0 : i64, tpu.core_type = #tpu.core_type<tc>, window_params = [{transform_indices = @transform_0, window_bounds = array<i64: 8, 32>}, {pipeline_mode = #tpu.pipeline_mode<synchronous>, transform_indices = @transform_1, window_bounds = array<i64: 32, 32>}, {pipeline_mode = #tpu.pipeline_mode<synchronous>, transform_indices = @transform_2, window_bounds = array<i64: 1, 32>}, {transform_indices = @transform_3, window_bounds = array<i64: 8, 32>}]} {
    %c0 = arith.constant 0 : index
    %c0_0 = arith.constant 0 : index
    %0 = vector.load %arg1[%c0, %c0_0] : memref<8x32xf32, #tpu.memory_space<vmem>>, vector<8x32xf32>
    %c0_1 = arith.constant 0 : index
    %c0_2 = arith.constant 0 : index
    %1 = vector.load %arg2[%c0_1, %c0_2] : memref<32x32xf32, #tpu.memory_space<vmem>>, vector<32x32xf32>
    %cst = arith.constant dense<0.000000e+00> : vector<8x32xf32>
    %2 = tpu.matmul %0, %1, %cst {dimension_numbers = #tpu.dot_dimension_numbers<[1], [1], [0], [0], [0, 0, 1, 0], [], []>} : vector<8x32xf32>, vector<32x32xf32>, vector<8x32xf32> -> vector<8x32xf32>
    %c0_3 = arith.constant 0 : index
    %c0_4 = arith.constant 0 : index
    %3 = vector.load %arg3[%c0_3, %c0_4] : memref<1x32xf32, #tpu.memory_space<vmem>>, vector<1x32xf32>
    %4 = vector.broadcast %3 : vector<1x32xf32> to vector<8x32xf32>
    %5 = arith.addf %2, %4 : vector<8x32xf32>
    %c0_5 = arith.constant 0 : index
    %c0_6 = arith.constant 0 : index
    %6 = vector.load %arg4[%c0_5, %c0_6] : memref<8x32xf32, #tpu.memory_space<vmem>>, vector<8x32xf32>
    tpu.vector_store %arg4[%c0_5, %c0_6], %5 {strides = array<i32>} : memref<8x32xf32, #tpu.memory_space<vmem>>, vector<8x32xf32>,
    return
  }
  func.func @transform_0(%arg0: i32) -> (i32, i32) {
    %c0_i32 = arith.constant 0 : i32
    %c0_i32_0 = arith.constant 0 : i32
    return %arg0, %c0_i32 : i32, i32
  }
  func.func @transform_1(%arg0: i32) -> (i32, i32) {
    %c0_i32 = arith.constant 0 : i32
    %c0_i32_0 = arith.constant 0 : i32
    %c0_i32_1 = arith.constant 0 : i32
    return %c0_i32, %c0_i32_0 : i32, i32
  }
  func.func @transform_2(%arg0: i32) -> (i32, i32) {
    %c0_i32 = arith.constant 0 : i32
    %c0_i32_0 = arith.constant 0 : i32
    %c0_i32_1 = arith.constant 0 : i32
    return %c0_i32, %c0_i32_0 : i32, i32
  }
  func.func @transform_3(%arg0: i32) -> (i32, i32) {
    %c0_i32 = arith.constant 0 : i32
    %c0_i32_0 = arith.constant 0 : i32
    return %arg0, %c0_i32 : i32, i32
  }
}

</mosaic_0001>

<llo_original>
// kernel: tpu_custom_call.1
$region0: #{tpu_custom_call.1}
  #allocation0 [shape = 'u32[]', space=smem, size = 0x4, offset = 0x4, fixed_abs, tag = 'smem constant byte address 0x4 - core index']
  #allocation1 [shape = 'u32[144,128]{1,0:T(1,128)}', space=vmem, size = 0x12000, scoped, tag = 'internal scratch']
  %s0 = inlined_call_operand.hbm [shape: f32[8,32], index: 0, kind: input, shape index: {}]
  %s1 = inlined_call_operand.hbm [shape: f32[32,32], index: 1, kind: input, shape index: {}]
  %s2 = inlined_call_operand.vmem [shape: f32[1,32], index: 2, kind: input, shape index: {}]
  %s3 = inlined_call_operand.hbm [shape: f32[8,32], index: 3, kind: output, shape index: {}]
  %s4 = sld [smem:[#allocation0]]
  $region30: #{tpu_custom_call.1} parent=0
    _
  %s6 = ssub.s32 1, %s4
  %s7 = scalar_select 0, %s6, %s4
  $region1: #{tpu_custom_call.1} parent=0
    #allocation2 [shape = 'u8[4096]{0}', space=vmem, size = 0x1000, scoped, tag = 'input window, operand 0, single buffered']
    #allocation3 [shape = 's32[1]{0}', space=sflag, size = 0x4, scoped, tag = 'scoped memory for tpu_custom_call.1']
    #allocation4 [shape = 's32[1]{0}', space=sflag, size = 0x4, scoped, tag = 'scoped memory for tpu_custom_call.1']
    #allocation5 [shape = 'u8[16384]{0}', space=vmem, size = 0x4000, scoped, tag = 'input window, operand 1, single buffered']
    #allocation6 [shape = 's32[1]{0}', space=sflag, size = 0x4, scoped, tag = 'scoped memory for tpu_custom_call.1']
    #allocation7 [shape = 'u8[4096]{0}', space=vmem, size = 0x1000, scoped, tag = 'output window, operand 0, single buffered']
    %8 = vsyncpa [#allocation3], 0
    %9 = vsyncpa [#allocation6], 0
    %10 = vsyncpa [#allocation4], 0
    // Predicated region
    $region2: #{tpu_custom_call.1} parent=1 // pred_check
      _
    $region3: #{tpu_custom_call.1} parent=1 // pred_check_branch
      %12 = sbr.rel (0) target = $region5
    $region4: #{tpu_custom_call.1} parent=1 // pred_region
      %s14 = ssub.s32 128, 128
      %15 = vsyncadd [#allocation3], %s14
      %s17 = sshll.u32 [#allocation2], 4
      %s18 = int_to_ptr.vmem [resolvable:$true] %s17
      %20 = dma.hbm_to_vmem [thread:$0]  %s0, 128, %s18, [#allocation3]
    $region5: #{tpu_custom_call.1} parent=1 // pred_fallthru
      _
    // Predicated region
    $region6: #{tpu_custom_call.1} parent=1 // pred_check
      _
    $region7: #{tpu_custom_call.1} parent=1 // pred_check_branch
      %22 = sbr.rel (0) target = $region9
    $region8: #{tpu_custom_call.1} parent=1 // pred_region
      %s24 = ssub.s32 512, 512
      %25 = vsyncadd [#allocation6], %s24
      %s26 = sshll.u32 [#allocation5], 4
      %s27 = int_to_ptr.vmem [resolvable:$true] %s26
      %32 = dma.hbm_to_vmem [thread:$0]  %s1, 512, %s27, [#allocation6], 128, 128, 8
    $region9: #{tpu_custom_call.1} parent=1 // pred_fallthru
      _
    // Predicated region
    $region10: #{tpu_custom_call.1} parent=1 // pred_check
      _
    $region11: #{tpu_custom_call.1} parent=1 // pred_check_branch
      %34 = sbr.rel (0) target = $region13
    $region12: #{tpu_custom_call.1} parent=1 // pred_region
      _
    $region13: #{tpu_custom_call.1} parent=1 // pred_fallthru
      _
    // Predicated region
    $region14: #{tpu_custom_call.1} parent=1 // pred_check
      _
    $region15: #{tpu_custom_call.1} parent=1 // pred_check_branch
      %36 = sbr.rel (0) target = $region17
    $region16: #{tpu_custom_call.1} parent=1 // pred_region
      %37 = dma.done [#allocation3], 128
    $region17: #{tpu_custom_call.1} parent=1 // pred_fallthru
      _
    // Predicated region
    $region18: #{tpu_custom_call.1} parent=1 // pred_check
      _
    $region19: #{tpu_custom_call.1} parent=1 // pred_check_branch
      %39 = sbr.rel (0) target = $region21
    $region20: #{tpu_custom_call.1} parent=1 // pred_region
      %40 = dma.done [#allocation6], 512
    $region21: #{tpu_custom_call.1} parent=1 // pred_fallthru
      _
    %v41 = vld [vmem:[#allocation2] sm:$0xff]
    %v42 = vld [vmem:[#allocation5] sm:$0xff]
    %v43 = vld [vmem:[#allocation5 + $0x8] sm:$0xff]
    %v44 = vld [vmem:[#allocation5 + $0x10] sm:$0xff]
    %v45 = vld [vmem:[#allocation5 + $0x18] sm:$0xff]
    %v46 = vld [vmem:[%s2] sm:$0x1]
    %v48 = vlaneseq
    %v49 = vshrl.u32 %v48, 7
    %v50 = vsub.s32 0, %v49
    %v51 = vrot.slane %v46, %v50
    %vm53 = vcmask 261120
    %v55 = vsel %vm53, %v41, 0
    %v58 = vsel %vm53, %v42, 0
    %v61 = vsel %vm53, %v43, 0
    %v64 = vsel %vm53, %v44, 0
    %v67 = vsel %vm53, %v45, 0
    %69 = vmatprep.subr.mxu0 0.0
    %70 = vmatpush1.xpose.msra.mxu0 0.0
    %71 = vmatprep.subr.mxu0 0.0
    %72 = vmatpush1.xpose.msra.mxu0 0.0
    %73 = vmatprep.subr.mxu0 0.0
    %74 = vmatpush1.xpose.msra.mxu0 0.0
    %75 = vmatprep.subr.mxu0 0.0
    %76 = vmatpush1.xpose.msra.mxu0 0.0
    %77 = vmatprep.subr.mxu0 0.0
    %78 = vmatpush1.xpose.msra.mxu0 0.0
    %79 = vmatprep.subr.mxu0 0.0
    %80 = vmatpush1.xpose.msra.mxu0 0.0
    %81 = vmatprep.subr.mxu0 0.0
    %82 = vmatpush1.xpose.msra.mxu0 0.0
    %83 = vmatprep.subr.mxu0 0.0
    %84 = vmatpush1.xpose.msra.mxu0 0.0
    %85 = vmatprep.subr.mxu0 0.0
    %86 = vmatpush1.xpose.msra.mxu0 0.0
    %87 = vmatprep.subr.mxu0 0.0
    %88 = vmatpush1.xpose.msra.mxu0 0.0
    %89 = vmatprep.subr.mxu0 0.0
    %90 = vmatpush1.xpose.msra.mxu0 0.0
    %91 = vmatprep.subr.mxu0 0.0
    %92 = vmatpush1.xpose.msra.mxu0 0.0
    %93 = vmatprep.subr.mxu0 0.0
    %94 = vmatpush1.xpose.msra.mxu0 %v67
    %95 = vmatprep.subr.mxu0 0.0
    %96 = vmatpush1.xpose.msra.mxu0 %v64
    %97 = vmatprep.subr.mxu0 0.0
    %98 = vmatpush1.xpose.msra.mxu0 %v61
    %99 = vmatprep.subr.mxu0 0.0
    %100 = vmatpush1.xpose.msra.mxu0 %v58
    %101 = vmatprep.subr.mxu0 0.0
    %102 = vmatpush2.xpose.msra.mxu0 0.0
    %103 = vmatprep.subr.mxu0 0.0
    %104 = vmatpush2.xpose.msra.mxu0 0.0
    %105 = vmatprep.subr.mxu0 0.0
    %106 = vmatpush2.xpose.msra.mxu0 0.0
    %107 = vmatprep.subr.mxu0 0.0
    %108 = vmatpush2.xpose.msra.mxu0 0.0
    %109 = vmatprep.subr.mxu0 0.0
    %110 = vmatpush2.xpose.msra.mxu0 0.0
    %111 = vmatprep.subr.mxu0 0.0
    %112 = vmatpush2.xpose.msra.mxu0 0.0
    %113 = vmatprep.subr.mxu0 0.0
    %114 = vmatpush2.xpose.msra.mxu0 0.0
    %115 = vmatprep.subr.mxu0 0.0
    %116 = vmatpush2.xpose.msra.mxu0 0.0
    %117 = vmatprep.subr.mxu0 0.0
    %118 = vmatpush2.xpose.msra.mxu0 0.0
    %119 = vmatprep.subr.mxu0 0.0
    %120 = vmatpush2.xpose.msra.mxu0 0.0
    %121 = vmatprep.subr.mxu0 0.0
    %122 = vmatpush2.xpose.msra.mxu0 0.0
    %123 = vmatprep.subr.mxu0 0.0
    %124 = vmatpush2.xpose.msra.mxu0 0.0
    %125 = vmatprep.subr.mxu0 0.0
    %126 = vmatpush2.xpose.msra.mxu0 0.0
    %127 = vmatprep.subr.mxu0 0.0
    %128 = vmatpush2.xpose.msra.mxu0 0.0
    %129 = vmatprep.subr.mxu0 0.0
    %130 = vmatpush2.xpose.msra.mxu0 0.0
    %131 = vmatprep.subr.mxu0 0.0
    %132 = vmatpush2.xpose.msra.mxu0 0.0
    %133 = vmatprep.mubr.f32.mxu0 0.0
    %134 = vmatmul.mubr.f32.gmra.mxu0 %v55
    %v135 = vpop.f32.mrf.mxu0
    %v136 = vadd.f32 %v51, %v135
    %v137 = vpop.f32.mrf.mxu0
    %138 = vdwg.mxu0
    %139 = vst.msk [vmem:[#allocation7] sm:$0xff] %vm53, %v136
    // Predicated region
    $region22: #{tpu_custom_call.1} parent=1 // pred_check
      _
    $region23: #{tpu_custom_call.1} parent=1 // pred_check_branch
      %141 = sbr.rel (0) target = $region25
    $region24: #{tpu_custom_call.1} parent=1 // pred_region
      %s143 = ssub.s32 128, 128
      %144 = vsyncadd [#allocation4], %s143
      %s146 = sshll.u32 [#allocation7], 4
      %s147 = int_to_ptr.vmem [resolvable:$true] %s146
      %149 = dma.vmem_to_hbm [thread:$0]  %s147, 128, %s3, [#allocation4]
    $region25: #{tpu_custom_call.1} parent=1 // pred_fallthru
      _
    // Predicated region
    $region26: #{tpu_custom_call.1} parent=1 // pred_check
      _
    $region27: #{tpu_custom_call.1} parent=1 // pred_check_branch
      %151 = sbr.rel (0) target = $region29
    $region28: #{tpu_custom_call.1} parent=1 // pred_region
      %152 = dma.done [#allocation4], 128
    $region29: #{tpu_custom_call.1} parent=1 // pred_fallthru
      _
    %153 = vsyncpa [#allocation3], 1
    %154 = vsyncpa [#allocation6], 1
    %155 = vsyncpa [#allocation4], 1

</llo_original>
